<compile_context>
chip_gen: v5e
topology: v5e:2x2
jax: 0.10.0
libtpu: 0.0.40
codegen_flags: <defaults>
</compile_context>

<pallas_src>
import functools

import jax
import jax.numpy as jnp
from jax.experimental import pallas as pl
from jax.experimental.pallas import tpu as pltpu


# -----------------------------------------------------------------------------
# Fused kernel: [concat-by-weight-split] conv3x3+BN+ReLU -> conv3x3+BN+ReLU
# -----------------------------------------------------------------------------
def _up_doubleconv_kernel(x2_ref, x1_ref, b1a_ref, b1b_ref, b2_ref,
                          s1_ref, t1_ref, s2_ref, t2_ref, o_ref, hmid_ref):
    # x2_ref  : (1, H+2, W*C2)   row-padded skip features (lane-dense slab)
    # x1_ref  : (1, H+2, W*C1)   row-padded upsampled features
    # b1a_ref : (3, W*C2, W*Cm)  banded conv1 weights, x2 channel slice
    # b1b_ref : (3, W*C1, W*Cm)  banded conv1 weights, x1 channel slice
    # b2_ref  : (3, W*Cm, W*Co)  banded conv2 weights
    # s*/t*   : (1, W*Cm|W*Co)   folded BN scale / bias, tiled over W
    # o_ref   : (1, H, W*Co)
    # hmid_ref: (H+16, W*Cm) f32 VMEM scratch; mid activation at rows [8, 8+H)
    #           so the interior store stays tile-aligned (8-sublane f32 tiles).
    H = x2_ref.shape[1] - 2
    wcm = b1a_ref.shape[2]
    wco = b2_ref.shape[2]

    # ---- conv1 over the virtual concat [x2, x1] + BN1 + ReLU ---------------
    acc1 = jnp.zeros((H, wcm), jnp.float32)
    for ky in range(3):  # one matmul per kernel row per concat source
        acc1 = acc1 + jnp.dot(x2_ref[0, ky:ky + H, :], b1a_ref[ky],
                              preferred_element_type=jnp.float32)
        acc1 = acc1 + jnp.dot(x1_ref[0, ky:ky + H, :], b1b_ref[ky],
                              preferred_element_type=jnp.float32)
    h_mid = jnp.maximum(acc1 * s1_ref[...] + t1_ref[...], 0.0)

    # ---- stage mid activation with zero row-halos in VMEM (no HBM trip) ----
    hmid_ref[...] = jnp.zeros(hmid_ref.shape, jnp.float32)
    hmid_ref[8:8 + H, :] = h_mid              # tile-aligned interior store

    # ---- conv2 + BN2 + ReLU -------------------------------------------------
    acc2 = jnp.zeros((H, wco), jnp.float32)
    for ky in range(3):
        acc2 = acc2 + jnp.dot(hmid_ref[7 + ky:7 + ky + H, :], b2_ref[ky],
                              preferred_element_type=jnp.float32)
    y = jnp.maximum(acc2 * s2_ref[...] + t2_ref[...], 0.0)
    o_ref[...] = y.reshape(1, H, wco).astype(o_ref.dtype)


# -----------------------------------------------------------------------------
# Host-side helpers
# -----------------------------------------------------------------------------
def _banded_conv_weights(w_hwio, width):
    """HWIO (3,3,Ci,Co) -> (3, width*Ci, width*Co) banded matrices B[ky].

    With input rows flattened as (width*Ci,) (zero rows above/below the image),
        out[h, wo*Co + co] = sum_ky  row_{h+ky-1} @ B[ky]
    reproduces a 3x3 cross-correlation with padding=1 (PyTorch Conv2d).
    """
    kh, kw, ci, co = w_hwio.shape
    b = jnp.zeros((kh, width * ci, width * co), w_hwio.dtype)
    for kx in range(kw):
        for wo in range(width):
            wi = wo + kx - 1  # input column feeding output column wo via tap kx
            if 0 <= wi < width:
                b = b.at[:, wi * ci:(wi + 1) * ci,
                         wo * co:(wo + 1) * co].set(w_hwio[:, kx])
    return b


def fold_bn(gamma, beta, mean, var, eps=1e-5):
    scale = gamma / jnp.sqrt(var + eps)
    bias = beta - mean * scale
    return scale.astype(jnp.float32), bias.astype(jnp.float32)


def bilinear_upsample_x2_align_corners(x_nhwc):
    """nn.Upsample(scale_factor=2, mode='bilinear', align_corners=True), NHWC."""
    N, H, W, C = x_nhwc.shape
    Ho, Wo = 2 * H, 2 * W

    def src_coords(n_in, n_out):
        if n_in == 1:
            return (jnp.zeros((n_out,), jnp.int32),
                    jnp.zeros((n_out,), jnp.int32),
                    jnp.zeros((n_out,), jnp.float32))
        pos = jnp.arange(n_out, dtype=jnp.float32) * (n_in - 1) / (n_out - 1)
        i0 = jnp.clip(jnp.floor(pos).astype(jnp.int32), 0, n_in - 1)
        i1 = jnp.clip(i0 + 1, 0, n_in - 1)
        return i0, i1, pos - i0.astype(jnp.float32)

    y0, y1, wy = src_coords(H, Ho)
    x0, x1, wx = src_coords(W, Wo)
    rows = (x_nhwc[:, y0] * (1.0 - wy)[None, :, None, None]
            + x_nhwc[:, y1] * wy[None, :, None, None])
    return (rows[:, :, x0] * (1.0 - wx)[None, None, :, None]
            + rows[:, :, x1] * wx[None, None, :, None])


# -----------------------------------------------------------------------------
# Up.forward
# -----------------------------------------------------------------------------
def up_forward(x1_nchw, x2_nchw, params):
    """Matches Up(in_channels, out_channels, bilinear=True).forward (BN eval)."""
    # NCHW -> NHWC.
    # TODO(synk): drop these relayouts if the surrounding model can stay NHWC.
    x1 = jnp.transpose(x1_nchw, (0, 2, 3, 1))
    x2 = jnp.transpose(x2_nchw, (0, 2, 3, 1))

    # 1) bilinear x2 upsample (align_corners=True). Kept in plain JAX (tiny,
    #    fuses with the surrounding relayout/pad).
    # TODO(synk): fold the upsample into the kernel via composed row/col blend matrices.
    x1 = bilinear_upsample_x2_align_corners(x1)

    # 2) F.pad so x1 matches x2 spatially (PyTorch [l, r, t, b]).
    diff_y = x2.shape[1] - x1.shape[1]
    diff_x = x2.shape[2] - x1.shape[2]
    x1 = jnp.pad(x1, ((0, 0),
                      (diff_y // 2, diff_y - diff_y // 2),
                      (diff_x // 2, diff_x - diff_x // 2),
                      (0, 0)))

    n, height, width, c2 = x2.shape
    c1 = x1.shape[-1]
    cm = params["w1"].shape[-1]
    co = params["w2"].shape[-1]

    # 3) lane-dense slabs (N, H+2, W*C) with a 1-row zero halo for conv1's
    #    vertical taps (horizontal taps/padding live in the banded weights).
    x2v = jnp.pad(x2, ((0, 0), (1, 1), (0, 0), (0, 0))).reshape(n, height + 2, width * c2)
    x1v = jnp.pad(x1, ((0, 0), (1, 1), (0, 0), (0, 0))).reshape(n, height + 2, width * c1)

    # 4) conv1 weights split along the concat boundary (torch.cat([x2, x1], 1))
    #    and re-expressed as banded per-kernel-row matmul matrices.
    w1 = params["w1"]                                     # (3,3,Cin,Cm) HWIO
    b1a = _banded_conv_weights(w1[:, :, :c2, :], width)   # x2 channel slice
    b1b = _banded_conv_weights(w1[:, :, c2:, :], width)   # x1 channel slice
    b2 = _banded_conv_weights(params["w2"], width)

    s1, t1 = fold_bn(params["bn1_gamma"], params["bn1_beta"],
                     params["bn1_mean"], params["bn1_var"])
    s2, t2 = fold_bn(params["bn2_gamma"], params["bn2_beta"],
                     params["bn2_mean"], params["bn2_var"])
    s1t = jnp.tile(s1, width).reshape(1, width * cm)
    t1t = jnp.tile(t1, width).reshape(1, width * cm)
    s2t = jnp.tile(s2, width).reshape(1, width * co)
    t2t = jnp.tile(t2, width).reshape(1, width * co)

    flops = 2 * n * 3 * height * (width * c2 * width * cm
                                  + width * c1 * width * cm
                                  + width * cm * width * co)
    bytes_accessed = 4 * (x2v.size + x1v.size + b1a.size + b1b.size + b2.size
                          + n * height * width * co)

    # TODO(synk): for large H, add a second grid axis over row tiles with 1-row
    # halos (pl.Element padding) so per-step blocks stay well inside v7x's 64 MiB VMEM.
    out2d = pl.pallas_call(
        _up_doubleconv_kernel,
        out_shape=jax.ShapeDtypeStruct((n, height, width * co), x2.dtype),
        grid_spec=pltpu.PrefetchScalarGridSpec(
            num_scalar_prefetch=0,
            grid=(n,),  # batch axis; no cross-iteration state -> safely "parallel"
            in_specs=[
                pl.BlockSpec((1, height + 2, width * c2), lambda i: (i, 0, 0)),
                pl.BlockSpec((1, height + 2, width * c1), lambda i: (i, 0, 0)),
                pl.BlockSpec((3, width * c2, width * cm), lambda i: (0, 0, 0)),
                pl.BlockSpec((3, width * c1, width * cm), lambda i: (0, 0, 0)),
                pl.BlockSpec((3, width * cm, width * co), lambda i: (0, 0, 0)),
                pl.BlockSpec((1, width * cm), lambda i: (0, 0)),
                pl.BlockSpec((1, width * cm), lambda i: (0, 0)),
                pl.BlockSpec((1, width * co), lambda i: (0, 0)),
                pl.BlockSpec((1, width * co), lambda i: (0, 0)),
            ],
            out_specs=pl.BlockSpec((1, height, width * co), lambda i: (i, 0, 0)),
            scratch_shapes=[pltpu.VMEM((height + 16, width * cm), jnp.float32)],
        ),
        compiler_params=pltpu.CompilerParams(
            # "parallel" -> megacore sharding on v7x (2 TCs); no-op on v5e/v6e.
            dimension_semantics=("parallel",),
            # explicit, conservative scoped-VMEM cap (usage here is < 1 MiB);
            # raise toward 48-64 MiB when row tiles grow for production shapes.
            vmem_limit_bytes=16 * 1024 * 1024,
        ),
        cost_estimate=pl.CostEstimate(flops=int(flops), transcendentals=0,
                                      bytes_accessed=int(bytes_accessed)),
    )(x2v, x1v, b1a, b1b, b2, s1t, t1t, s2t, t2t)

    out = out2d.reshape(n, height, width, co)
    return jnp.transpose(out, (0, 3, 1, 2))     # NHWC -> NCHW


# -----------------------------------------------------------------------------
# Pure-JAX reference (verification)
# -----------------------------------------------------------------------------
def _conv3x3_bn_relu_ref(x_nhwc, w_hwio, scale, bias):
    y = jax.lax.conv_general_dilated(
        x_nhwc, w_hwio, window_strides=(1, 1), padding="SAME",
        dimension_numbers=("NHWC", "HWIO", "NHWC"))
    return jnp.maximum(y * scale[None, None, None, :] + bias[None, None, None, :], 0.0)


def up_forward_ref(x1_nchw, x2_nchw, params):
    x1 = jnp.transpose(x1_nchw, (0, 2, 3, 1))
    x2 = jnp.transpose(x2_nchw, (0, 2, 3, 1))
    x1 = bilinear_upsample_x2_align_corners(x1)
    diff_y = x2.shape[1] - x1.shape[1]
    diff_x = x2.shape[2] - x1.shape[2]
    x1 = jnp.pad(x1, ((0, 0), (diff_y // 2, diff_y - diff_y // 2),
                      (diff_x // 2, diff_x - diff_x // 2), (0, 0)))
    x = jnp.concatenate([x2, x1], axis=-1)
    s1, t1 = fold_bn(params["bn1_gamma"], params["bn1_beta"],
                     params["bn1_mean"], params["bn1_var"])
    s2, t2 = fold_bn(params["bn2_gamma"], params["bn2_beta"],
                     params["bn2_mean"], params["bn2_var"])
    h = _conv3x3_bn_relu_ref(x, params["w1"], s1, t1)
    out = _conv3x3_bn_relu_ref(h, params["w2"], s2, t2)
    return jnp.transpose(out, (0, 3, 1, 2))


# -----------------------------------------------------------------------------
# Deterministic parameter init (shapes follow Up(in_channels=8, out_channels=4))
# -----------------------------------------------------------------------------
def init_params(key, in_channels, out_channels):
    mid_channels = in_channels // 2  # DoubleConv mid_channels for bilinear Up
    k = jax.random.split(key, 8)
    w1 = 0.1 * jax.random.normal(k[0], (3, 3, in_channels, mid_channels), jnp.float32)
    w2 = 0.1 * jax.random.normal(k[1], (3, 3, mid_channels, out_channels), jnp.float32)
    return {
        "w1": w1,
        "bn1_gamma": 1.0 + 0.1 * jax.random.normal(k[2], (mid_channels,), jnp.float32),
        "bn1_beta": 0.05 * jax.random.normal(k[3], (mid_channels,), jnp.float32),
        "bn1_mean": 0.02 * jax.random.normal(k[4], (mid_channels,), jnp.float32),
        "bn1_var": 1.0 + 0.1 * jax.random.uniform(k[5], (mid_channels,), jnp.float32),
        "w2": w2,
        "bn2_gamma": 1.0 + 0.1 * jax.random.normal(k[6], (out_channels,), jnp.float32),
        "bn2_beta": 0.05 * jax.random.normal(k[7], (out_channels,), jnp.float32),
        "bn2_mean": jnp.zeros((out_channels,), jnp.float32),
        "bn2_var": jnp.ones((out_channels,), jnp.float32),
    }


if __name__ == "__main__":
    IN_CHANNELS = 8     # channels after concat (x2 and upsampled x1 each carry 4)
    OUT_CHANNELS = 4

    key = jax.random.PRNGKey(0)
    kx1, kx2, kp = jax.random.split(key, 3)

    # x1: deeper feature map (half spatial), x2: skip connection; NCHW layout.
    x1 = jax.random.normal(kx1, (2, IN_CHANNELS // 2, 8, 8), jnp.float32)
    x2 = jax.random.normal(kx2, (2, IN_CHANNELS // 2, 16, 16), jnp.float32)
    params = init_params(kp, IN_CHANNELS, OUT_CHANNELS)

    fwd = jax.jit(functools.partial(up_forward, params=params))
    out = jax.block_until_ready(fwd(x1, x2))
    assert out.shape == (2, OUT_CHANNELS, 16, 16), out.shape

    ref = jax.block_until_ready(up_forward_ref(x1, x2, params))
    assert jnp.allclose(out, ref, rtol=1e-3, atol=1e-3), \
        float(jnp.max(jnp.abs(out - ref)))

    print("KERNEL_OK")
</pallas_src>

<mosaic_0001>
module attributes {stable_mosaic.version = 11 : i64} {
  func.func @_up_doubleconv_kernel(%arg0: i32, %arg1: memref<1x18x64xf32, #tpu.memory_space<vmem>>, %arg2: memref<1x18x64xf32, #tpu.memory_space<vmem>>, %arg3: memref<3x64x64xf32, #tpu.memory_space<vmem>>, %arg4: memref<3x64x64xf32, #tpu.memory_space<vmem>>, %arg5: memref<3x64x64xf32, #tpu.memory_space<vmem>>, %arg6: memref<1x64xf32, #tpu.memory_space<vmem>>, %arg7: memref<1x64xf32, #tpu.memory_space<vmem>>, %arg8: memref<1x64xf32, #tpu.memory_space<vmem>>, %arg9: memref<1x64xf32, #tpu.memory_space<vmem>>, %arg10: memref<1x16x64xf32, #tpu.memory_space<vmem>>, %arg11: memref<32x64xf32, #tpu.memory_space<vmem>>) attributes {dimension_semantics = [#tpu.dimension_semantics<parallel>], iteration_bounds = array<i64: 2>, scalar_prefetch = 0 : i64, scratch_operands = 1 : i64, tpu.core_type = #tpu.core_type<tc>, window_params = [{transform_indices = @transform_0, window_bounds = array<i64: 1, 18, 64>}, {transform_indices = @transform_1, window_bounds = array<i64: 1, 18, 64>}, {pipeline_mode = #tpu.pipeline_mode<synchronous>, transform_indices = @transform_2, window_bounds = array<i64: 3, 64, 64>}, {pipeline_mode = #tpu.pipeline_mode<synchronous>, transform_indices = @transform_3, window_bounds = array<i64: 3, 64, 64>}, {pipeline_mode = #tpu.pipeline_mode<synchronous>, transform_indices = @transform_4, window_bounds = array<i64: 3, 64, 64>}, {pipeline_mode = #tpu.pipeline_mode<synchronous>, transform_indices = @transform_5, window_bounds = array<i64: 1, 64>}, {pipeline_mode = #tpu.pipeline_mode<synchronous>, transform_indices = @transform_6, window_bounds = array<i64: 1, 64>}, {pipeline_mode = #tpu.pipeline_mode<synchronous>, transform_indices = @transform_7, window_bounds = array<i64: 1, 64>}, {pipeline_mode = #tpu.pipeline_mode<synchronous>, transform_indices = @transform_8, window_bounds = array<i64: 1, 64>}, {transform_indices = @transform_9, window_bounds = array<i64: 1, 16, 64>}]} {
    %cst = arith.constant 0.000000e+00 : f32
    %0 = vector.broadcast %cst : f32 to vector<16x64xf32>
    %c0 = arith.constant 0 : index
    %c0_0 = arith.constant 0 : index
    %c0_1 = arith.constant 0 : index
    %1 = vector.load %arg1[%c0, %c0_0, %c0_1] : memref<1x18x64xf32, #tpu.memory_space<vmem>>, vector<1x16x64xf32>
    %2 = vector.shape_cast %1 : vector<1x16x64xf32> to vector<16x64xf32>
    %c0_2 = arith.constant 0 : index
    %c0_3 = arith.constant 0 : index
    %c0_4 = arith.constant 0 : index
    %3 = vector.load %arg3[%c0_2, %c0_3, %c0_4] : memref<3x64x64xf32, #tpu.memory_space<vmem>>, vector<1x64x64xf32>
    %4 = vector.shape_cast %3 : vector<1x64x64xf32> to vector<64x64xf32>
    %cst_5 = arith.constant dense<0.000000e+00> : vector<16x64xf32>
    %5 = tpu.matmul %2, %4, %cst_5 {dimension_numbers = #tpu.dot_dimension_numbers<[1], [0], [0], [1], [0, 0, 1, 1], [], []>} : vector<16x64xf32>, vector<64x64xf32>, vector<16x64xf32> -> vector<16x64xf32>
    %6 = arith.addf %0, %5 : vector<16x64xf32>
    %c0_6 = arith.constant 0 : index
    %c0_7 = arith.constant 0 : index
    %c0_8 = arith.constant 0 : index
    %7 = vector.load %arg2[%c0_6, %c0_7, %c0_8] : memref<1x18x64xf32, #tpu.memory_space<vmem>>, vector<1x16x64xf32>
    %8 = vector.shape_cast %7 : vector<1x16x64xf32> to vector<16x64xf32>
    %c0_9 = arith.constant 0 : index
    %c0_10 = arith.constant 0 : index
    %c0_11 = arith.constant 0 : index
    %9 = vector.load %arg4[%c0_9, %c0_10, %c0_11] : memref<3x64x64xf32, #tpu.memory_space<vmem>>, vector<1x64x64xf32>
    %10 = vector.shape_cast %9 : vector<1x64x64xf32> to vector<64x64xf32>
    %cst_12 = arith.constant dense<0.000000e+00> : vector<16x64xf32>
    %11 = tpu.matmul %8, %10, %cst_12 {dimension_numbers = #tpu.dot_dimension_numbers<[1], [0], [0], [1], [0, 0, 1, 1], [], []>} : vector<16x64xf32>, vector<64x64xf32>, vector<16x64xf32> -> vector<16x64xf32>
    %12 = arith.addf %6, %11 : vector<16x64xf32>
    %c0_13 = arith.constant 0 : index
    %c1 = arith.constant 1 : index
    %c0_14 = arith.constant 0 : index
    %13 = vector.load %arg1[%c0_13, %c1, %c0_14] : memref<1x18x64xf32, #tpu.memory_space<vmem>>, vector<1x16x64xf32>
    %14 = vector.shape_cast %13 : vector<1x16x64xf32> to vector<16x64xf32>
    %c1_15 = arith.constant 1 : index
    %c0_16 = arith.constant 0 : index
    %c0_17 = arith.constant 0 : index
    %15 = vector.load %arg3[%c1_15, %c0_16, %c0_17] : memref<3x64x64xf32, #tpu.memory_space<vmem>>, vector<1x64x64xf32>
    %16 = vector.shape_cast %15 : vector<1x64x64xf32> to vector<64x64xf32>
    %cst_18 = arith.constant dense<0.000000e+00> : vector<16x64xf32>
    %17 = tpu.matmul %14, %16, %cst_18 {dimension_numbers = #tpu.dot_dimension_numbers<[1], [0], [0], [1], [0, 0, 1, 1], [], []>} : vector<16x64xf32>, vector<64x64xf32>, vector<16x64xf32> -> vector<16x64xf32>
    %18 = arith.addf %12, %17 : vector<16x64xf32>
    %c0_19 = arith.constant 0 : index
    %c1_20 = arith.constant 1 : index
    %c0_21 = arith.constant 0 : index
    %19 = vector.load %arg2[%c0_19, %c1_20, %c0_21] : memref<1x18x64xf32, #tpu.memory_space<vmem>>, vector<1x16x64xf32>
    %20 = vector.shape_cast %19 : vector<1x16x64xf32> to vector<16x64xf32>
    %c1_22 = arith.constant 1 : index
    %c0_23 = arith.constant 0 : index
    %c0_24 = arith.constant 0 : index
    %21 = vector.load %arg4[%c1_22, %c0_23, %c0_24] : memref<3x64x64xf32, #tpu.memory_space<vmem>>, vector<1x64x64xf32>
    %22 = vector.shape_cast %21 : vector<1x64x64xf32> to vector<64x64xf32>
    %cst_25 = arith.constant dense<0.000000e+00> : vector<16x64xf32>
    %23 = tpu.matmul %20, %22, %cst_25 {dimension_numbers = #tpu.dot_dimension_numbers<[1], [0], [0], [1], [0, 0, 1, 1], [], []>} : vector<16x64xf32>, vector<64x64xf32>, vector<16x64xf32> -> vector<16x64xf32>
    %24 = arith.addf %18, %23 : vector<16x64xf32>
    %c0_26 = arith.constant 0 : index
    %c2 = arith.constant 2 : index
    %c0_27 = arith.constant 0 : index
    %25 = vector.load %arg1[%c0_26, %c2, %c0_27] : memref<1x18x64xf32, #tpu.memory_space<vmem>>, vector<1x16x64xf32>
    %26 = vector.shape_cast %25 : vector<1x16x64xf32> to vector<16x64xf32>
    %c2_28 = arith.constant 2 : index
    %c0_29 = arith.constant 0 : index
    %c0_30 = arith.constant 0 : index
    %27 = vector.load %arg3[%c2_28, %c0_29, %c0_30] : memref<3x64x64xf32, #tpu.memory_space<vmem>>, vector<1x64x64xf32>
    %28 = vector.shape_cast %27 : vector<1x64x64xf32> to vector<64x64xf32>
    %cst_31 = arith.constant dense<0.000000e+00> : vector<16x64xf32>
    %29 = tpu.matmul %26, %28, %cst_31 {dimension_numbers = #tpu.dot_dimension_numbers<[1], [0], [0], [1], [0, 0, 1, 1], [], []>} : vector<16x64xf32>, vector<64x64xf32>, vector<16x64xf32> -> vector<16x64xf32>
    %30 = arith.addf %24, %29 : vector<16x64xf32>
    %c0_32 = arith.constant 0 : index
    %c2_33 = arith.constant 2 : index
    %c0_34 = arith.constant 0 : index
    %31 = vector.load %arg2[%c0_32, %c2_33, %c0_34] : memref<1x18x64xf32, #tpu.memory_space<vmem>>, vector<1x16x64xf32>
    %32 = vector.shape_cast %31 : vector<1x16x64xf32> to vector<16x64xf32>
    %c2_35 = arith.constant 2 : index
    %c0_36 = arith.constant 0 : index
    %c0_37 = arith.constant 0 : index
    %33 = vector.load %arg4[%c2_35, %c0_36, %c0_37] : memref<3x64x64xf32, #tpu.memory_space<vmem>>, vector<1x64x64xf32>
    %34 = vector.shape_cast %33 : vector<1x64x64xf32> to vector<64x64xf32>
    %cst_38 = arith.constant dense<0.000000e+00> : vector<16x64xf32>
    %35 = tpu.matmul %32, %34, %cst_38 {dimension_numbers = #tpu.dot_dimension_numbers<[1], [0], [0], [1], [0, 0, 1, 1], [], []>} : vector<16x64xf32>, vector<64x64xf32>, vector<16x64xf32> -> vector<16x64xf32>
    %36 = arith.addf %30, %35 : vector<16x64xf32>
    %c0_39 = arith.constant 0 : index
    %c0_40 = arith.constant 0 : index
    %37 = vector.load %arg6[%c0_39, %c0_40] : memref<1x64xf32, #tpu.memory_space<vmem>>, vector<1x64xf32>
    %38 = vector.broadcast %37 : vector<1x64xf32> to vector<16x64xf32>
    %39 = arith.mulf %36, %38 : vector<16x64xf32>
    %c0_41 = arith.constant 0 : index
    %c0_42 = arith.constant 0 : index
    %40 = vector.load %arg7[%c0_41, %c0_42] : memref<1x64xf32, #tpu.memory_space<vmem>>, vector<1x64xf32>
    %41 = vector.broadcast %40 : vector<1x64xf32> to vector<16x64xf32>
    %42 = arith.addf %39, %41 : vector<16x64xf32>
    %cst_43 = arith.constant 0.000000e+00 : f32
    %43 = vector.broadcast %cst_43 : f32 to vector<16x64xf32>
    %44 = arith.maximumf %42, %43 : vector<16x64xf32>
    %cst_44 = arith.constant 0.000000e+00 : f32
    %45 = vector.broadcast %cst_44 : f32 to vector<32x64xf32>
    %c0_45 = arith.constant 0 : index
    %c0_46 = arith.constant 0 : index
    %46 = vector.load %arg11[%c0_45, %c0_46] : memref<32x64xf32, #tpu.memory_space<vmem>>, vector<32x64xf32>
    tpu.vector_store %arg11[%c0_45, %c0_46], %45 {strides = array<i32>} : memref<32x64xf32, #tpu.memory_space<vmem>>, vector<32x64xf32>,
    %c8 = arith.constant 8 : index
    %c0_47 = arith.constant 0 : index
    %47 = vector.load %arg11[%c8, %c0_47] : memref<32x64xf32, #tpu.memory_space<vmem>>, vector<16x64xf32>
    tpu.vector_store %arg11[%c8, %c0_47], %44 {strides = array<i32>} : memref<32x64xf32, #tpu.memory_space<vmem>>, vector<16x64xf32>,
    %cst_48 = arith.constant 0.000000e+00 : f32
    %48 = vector.broadcast %cst_48 : f32 to vector<16x64xf32>
    %c7 = arith.constant 7 : index
    %c0_49 = arith.constant 0 : index
    %49 = vector.load %arg11[%c7, %c0_49] : memref<32x64xf32, #tpu.memory_space<vmem>>, vector<16x64xf32>
    %c0_50 = arith.constant 0 : index
    %c0_51 = arith.constant 0 : index
    %c0_52 = arith.constant 0 : index
    %50 = vector.load %arg5[%c0_50, %c0_51, %c0_52] : memref<3x64x64xf32, #tpu.memory_space<vmem>>, vector<1x64x64xf32>
    %51 = vector.shape_cast %50 : vector<1x64x64xf32> to vector<64x64xf32>
    %cst_53 = arith.constant dense<0.000000e+00> : vector<16x64xf32>
    %52 = tpu.matmul %49, %51, %cst_53 {dimension_numbers = #tpu.dot_dimension_numbers<[1], [0], [0], [1], [0, 0, 1, 1], [], []>} : vector<16x64xf32>, vector<64x64xf32>, vector<16x64xf32> -> vector<16x64xf32>
    %53 = arith.addf %48, %52 : vector<16x64xf32>
    %c8_54 = arith.constant 8 : index
    %c0_55 = arith.constant 0 : index
    %54 = vector.load %arg11[%c8_54, %c0_55] : memref<32x64xf32, #tpu.memory_space<vmem>>, vector<16x64xf32>
    %c1_56 = arith.constant 1 : index
    %c0_57 = arith.constant 0 : index
    %c0_58 = arith.constant 0 : index
    %55 = vector.load %arg5[%c1_56, %c0_57, %c0_58] : memref<3x64x64xf32, #tpu.memory_space<vmem>>, vector<1x64x64xf32>
    %56 = vector.shape_cast %55 : vector<1x64x64xf32> to vector<64x64xf32>
    %cst_59 = arith.constant dense<0.000000e+00> : vector<16x64xf32>
    %57 = tpu.matmul %54, %56, %cst_59 {dimension_numbers = #tpu.dot_dimension_numbers<[1], [0], [0], [1], [0, 0, 1, 1], [], []>} : vector<16x64xf32>, vector<64x64xf32>, vector<16x64xf32> -> vector<16x64xf32>
    %58 = arith.addf %53, %57 : vector<16x64xf32>
    %c9 = arith.constant 9 : index
    %c0_60 = arith.constant 0 : index
    %59 = vector.load %arg11[%c9, %c0_60] : memref<32x64xf32, #tpu.memory_space<vmem>>, vector<16x64xf32>
    %c2_61 = arith.constant 2 : index
    %c0_62 = arith.constant 0 : index
    %c0_63 = arith.constant 0 : index
    %60 = vector.load %arg5[%c2_61, %c0_62, %c0_63] : memref<3x64x64xf32, #tpu.memory_space<vmem>>, vector<1x64x64xf32>
    %61 = vector.shape_cast %60 : vector<1x64x64xf32> to vector<64x64xf32>
    %cst_64 = arith.constant dense<0.000000e+00> : vector<16x64xf32>
    %62 = tpu.matmul %59, %61, %cst_64 {dimension_numbers = #tpu.dot_dimension_numbers<[1], [0], [0], [1], [0, 0, 1, 1], [], []>} : vector<16x64xf32>, vector<64x64xf32>, vector<16x64xf32> -> vector<16x64xf32>
    %63 = arith.addf %58, %62 : vector<16x64xf32>
    %c0_65 = arith.constant 0 : index
    %c0_66 = arith.constant 0 : index
    %64 = vector.load %arg8[%c0_65, %c0_66] : memref<1x64xf32, #tpu.memory_space<vmem>>, vector<1x64xf32>
    %65 = vector.broadcast %64 : vector<1x64xf32> to vector<16x64xf32>
    %66 = arith.mulf %63, %65 : vector<16x64xf32>
    %c0_67 = arith.constant 0 : index
    %c0_68 = arith.constant 0 : index
    %67 = vector.load %arg9[%c0_67, %c0_68] : memref<1x64xf32, #tpu.memory_space<vmem>>, vector<1x64xf32>
    %68 = vector.broadcast %67 : vector<1x64xf32> to vector<16x64xf32>
    %69 = arith.addf %66, %68 : vector<16x64xf32>
    %cst_69 = arith.constant 0.000000e+00 : f32
    %70 = vector.broadcast %cst_69 : f32 to vector<16x64xf32>
    %71 = arith.maximumf %69, %70 : vector<16x64xf32>
    %72 = vector.shape_cast %71 : vector<16x64xf32> to vector<1x16x64xf32>
    %c0_70 = arith.constant 0 : index
    %c0_71 = arith.constant 0 : index
    %c0_72 = arith.constant 0 : index
    %73 = vector.load %arg10[%c0_70, %c0_71, %c0_72] : memref<1x16x64xf32, #tpu.memory_space<vmem>>, vector<1x16x64xf32>
    tpu.vector_store %arg10[%c0_70, %c0_71, %c0_72], %72 {strides = array<i32>} : memref<1x16x64xf32, #tpu.memory_space<vmem>>, vector<1x16x64xf32>,
    return
  }
  func.func @transform_0(%arg0: i32) -> (i32, i32, i32) {
    %c0_i32 = arith.constant 0 : i32
    %c0_i32_0 = arith.constant 0 : i32
    %c0_i32_1 = arith.constant 0 : i32
    return %arg0, %c0_i32, %c0_i32_0 : i32, i32, i32
  }
  func.func @transform_1(%arg0: i32) -> (i32, i32, i32) {
    %c0_i32 = arith.constant 0 : i32
    %c0_i32_0 = arith.constant 0 : i32
    %c0_i32_1 = arith.constant 0 : i32
    return %arg0, %c0_i32, %c0_i32_0 : i32, i32, i32
  }
  func.func @transform_2(%arg0: i32) -> (i32, i32, i32) {
    %c0_i32 = arith.constant 0 : i32
    %c0_i32_0 = arith.constant 0 : i32
    %c0_i32_1 = arith.constant 0 : i32
    %c0_i32_2 = arith.constant 0 : i32
    return %c0_i32, %c0_i32_0, %c0_i32_1 : i32, i32, i32
  }
  func.func @transform_3(%arg0: i32) -> (i32, i32, i32) {
    %c0_i32 = arith.constant 0 : i32
    %c0_i32_0 = arith.constant 0 : i32
    %c0_i32_1 = arith.constant 0 : i32
    %c0_i32_2 = arith.constant 0 : i32
    return %c0_i32, %c0_i32_0, %c0_i32_1 : i32, i32, i32
  }
  func.func @transform_4(%arg0: i32) -> (i32, i32, i32) {
    %c0_i32 = arith.constant 0 : i32
    %c0_i32_0 = arith.constant 0 : i32
    %c0_i32_1 = arith.constant 0 : i32
    %c0_i32_2 = arith.constant 0 : i32
    return %c0_i32, %c0_i32_0, %c0_i32_1 : i32, i32, i32
  }
  func.func @transform_5(%arg0: i32) -> (i32, i32) {
    %c0_i32 = arith.constant 0 : i32
    %c0_i32_0 = arith.constant 0 : i32
    %c0_i32_1 = arith.constant 0 : i32
    return %c0_i32, %c0_i32_0 : i32, i32
  }
  func.func @transform_6(%arg0: i32) -> (i32, i32) {
    %c0_i32 = arith.constant 0 : i32
    %c0_i32_0 = arith.constant 0 : i32
    %c0_i32_1 = arith.constant 0 : i32
    return %c0_i32, %c0_i32_0 : i32, i32
  }
  func.func @transform_7(%arg0: i32) -> (i32, i32) {
    %c0_i32 = arith.constant 0 : i32
    %c0_i32_0 = arith.constant 0 : i32
    %c0_i32_1 = arith.constant 0 : i32
    return %c0_i32, %c0_i32_0 : i32, i32
  }
  func.func @transform_8(%arg0: i32) -> (i32, i32) {
    %c0_i32 = arith.constant 0 : i32
    %c0_i32_0 = arith.constant 0 : i32
    %c0_i32_1 = arith.constant 0 : i32
    return %c0_i32, %c0_i32_0 : i32, i32
  }
  func.func @transform_9(%arg0: i32) -> (i32, i32, i32) {
    %c0_i32 = arith.constant 0 : i32
    %c0_i32_0 = arith.constant 0 : i32
    %c0_i32_1 = arith.constant 0 : i32
    return %arg0, %c0_i32, %c0_i32_0 : i32, i32, i32
  }
}

</mosaic_0001>

<llo_original>
// kernel: tile.18
$region0: #{tile.18}
  #allocation0 [shape = 's32[1]{0}', space=sflag, size = 0x4, scoped, tag = 'scoped memory for tile.18']
  %s0 = inlined_call_operand.vmem [shape: f32[4], index: 0, kind: input, shape index: {}]
  %s1 = inlined_call_operand.vmem [shape: f32[16,4], index: 1, kind: output, shape index: {}]
  // Predicated region
  $region2: #{tile.18} parent=0 // pred_check
    _
  $region3: #{tile.18} parent=0 // pred_check_branch
    %3 = sbr.rel (0) target = $region5
  $region4: #{tile.18} parent=0 // pred_region
    _
  $region5: #{tile.18} parent=0 // pred_fallthru
    _
  %v4 = vld [vmem:[%s0] ss:$0 sm:$0xff]
  %5 = vst [vmem:[%s1] sm:$0xff] %v4
  %s6 = scalar_lea.vmem %s1, 8
  %7 = vst [vmem:[%s6] sm:$0xff] %v4

// kernel: tile.19
$region0: #{tile.19}
  %s0 = inlined_call_operand.vmem [shape: f32[16,4], index: 0, kind: input, shape index: {}]
  %s1 = inlined_call_operand.vmem [shape: f32[1,64], index: 1, kind: output, shape index: {}]
  $region1: #{tile.19} parent=0
    #allocation0 [shape = 'u8[4096]{0}', space=vmem, size = 0x1000, scoped, tag = 'scoped mem for output reshape']
    %v2 = vld [vmem:[%s0] sm:$0x1]
    %vm3 = vcmask 31744
    %4 = vst.msk [vmem:[#allocation0] sm:$0x1] %vm3, %v2
    %s5 = scalar_lea.vmem %s0, 15
    %v6 = vld [vmem:[%s5] sm:$0x1]
    %7 = vrot.lane.b32.xlu0 %v6, 60
    %v8 = vpop.permute.xlu0 %7
    %vm9 = vcmask 523744
    %10 = vst.msk [vmem:[#allocation0] sm:$0x1] %vm9, %v8
    %s11 = scalar_lea.vmem %s0, 14
    %v12 = vld [vmem:[%s11] sm:$0x1]
    %13 = vrot.lane.b32.xlu0 %v12, 56
    %v14 = vpop.permute.xlu0 %13
    %vm15 = vcmask 490944
    %16 = vst.msk [vmem:[#allocation0] sm:$0x1] %vm15, %v14
    %s17 = scalar_lea.vmem %s0, 13
    %v18 = vld [vmem:[%s17] sm:$0x1]
    %19 = vrot.lane.b32.xlu0 %v18, 52
    %v20 = vpop.permute.xlu0 %19
    %vm21 = vcmask 458144
    %22 = vst.msk [vmem:[#allocation0] sm:$0x1] %vm21, %v20
    %s23 = scalar_lea.vmem %s0, 12
    %v24 = vld [vmem:[%s23] sm:$0x1]
    %25 = vrot.lane.b32.xlu0 %v24, 48
    %v26 = vpop.permute.xlu0 %25
    %vm27 = vcmask 425344
    %28 = vst.msk [vmem:[#allocation0] sm:$0x1] %vm27, %v26
    %s29 = scalar_lea.vmem %s0, 11
    %v30 = vld [vmem:[%s29] sm:$0x1]
    %31 = vrot.lane.b32.xlu0 %v30, 44
    %v32 = vpop.permute.xlu0 %31
    %vm33 = vcmask 392544
    %34 = vst.msk [vmem:[#allocation0] sm:$0x1] %vm33, %v32
    %s35 = scalar_lea.vmem %s0, 10
    %v36 = vld [vmem:[%s35] sm:$0x1]
    %37 = vrot.lane.b32.xlu0 %v36, 40
    %v38 = vpop.permute.xlu0 %37
    %vm39 = vcmask 359744
    %40 = vst.msk [vmem:[#allocation0] sm:$0x1] %vm39, %v38
    %s41 = scalar_lea.vmem %s0, 9
    %v42 = vld [vmem:[%s41] sm:$0x1]
    %43 = vrot.lane.b32.xlu0 %v42, 36
    %v44 = vpop.permute.xlu0 %43
    %vm45 = vcmask 326944
    %46 = vst.msk [vmem:[#allocation0] sm:$0x1] %vm45, %v44
    %s47 = scalar_lea.vmem %s0, 8
    %v48 = vld [vmem:[%s47] sm:$0x1]
    %49 = vrot.lane.b32.xlu0 %v48, 32
    %v50 = vpop.permute.xlu0 %49
    %vm51 = vcmask 294144
    %52 = vst.msk [vmem:[#allocation0] sm:$0x1] %vm51, %v50
    %s53 = scalar_lea.vmem %s0, 7
    %v54 = vld [vmem:[%s53] sm:$0x1]
    %55 = vrot.lane.b32.xlu0 %v54, 28
    %v56 = vpop.permute.xlu0 %55
    %vm57 = vcmask 261344
    %58 = vst.msk [vmem:[#allocation0] sm:$0x1] %vm57, %v56
    %s59 = scalar_lea.vmem %s0, 6
    %v60 = vld [vmem:[%s59] sm:$0x1]
    %61 = vrot.lane.b32.xlu0 %v60, 24
    %v62 = vpop.permute.xlu0 %61
    %vm63 = vcmask 228544
    %64 = vst.msk [vmem:[#allocation0] sm:$0x1] %vm63, %v62
    %s65 = scalar_lea.vmem %s0, 5
    %v66 = vld [vmem:[%s65] sm:$0x1]
    %67 = vrot.lane.b32.xlu0 %v66, 20
    %v68 = vpop.permute.xlu0 %67
    %vm69 = vcmask 195744
    %70 = vst.msk [vmem:[#allocation0] sm:$0x1] %vm69, %v68
    %s71 = scalar_lea.vmem %s0, 4
    %v72 = vld [vmem:[%s71] sm:$0x1]
    %73 = vrot.lane.b32.xlu0 %v72, 16
    %v74 = vpop.permute.xlu0 %73
    %vm75 = vcmask 162944
    %76 = vst.msk [vmem:[#allocation0] sm:$0x1] %vm75, %v74
    %s77 = scalar_lea.vmem %s0, 3
    %v78 = vld [vmem:[%s77] sm:$0x1]
    %79 = vrot.lane.b32.xlu0 %v78, 12
    %v80 = vpop.permute.xlu0 %79
    %vm81 = vcmask 130144
    %82 = vst.msk [vmem:[#allocation0] sm:$0x1] %vm81, %v80
    %s83 = scalar_lea.vmem %s0, 2
    %v84 = vld [vmem:[%s83] sm:$0x1]
    %85 = vrot.lane.b32.xlu0 %v84, 8
    %v86 = vpop.permute.xlu0 %85
    %vm87 = vcmask 97344
    %88 = vst.msk [vmem:[#allocation0] sm:$0x1] %vm87, %v86
    %s89 = scalar_lea.vmem %s0, 1
    %v90 = vld [vmem:[%s89] sm:$0x1]
    %91 = vrot.lane.b32.xlu0 %v90, 4
    %v92 = vpop.permute.xlu0 %91
    %vm93 = vcmask 64544
    %94 = vst.msk [vmem:[#allocation0] sm:$0x1] %vm93, %v92
    %s96 = ssub.s32 2, 1
    %v97 = vld [vmem:[#allocation0] sm:%s96]
    %s99 = ssub.s32 2, 1
    %100 = vst [vmem:[%s1] sm:%s99] %v97

// kernel: up_forward.1
$region0: #{up_forward.1}
  #allocation0 [shape = 'u32[]', space=smem, size = 0x4, offset = 0x4, fixed_abs, tag = 'smem constant byte address 0x4 - core index']
  #allocation1 [shape = 'u32[72,128]{1,0:T(1,128)}', space=vmem, size = 0x9000, scoped, tag = 'internal scratch']
  #allocation2 [shape = 'f32[32,64]{1,0:T(8,128)}', space=vmem, size = 0x4000, scoped, tag = 'scratch operand']
  %s0 = inlined_call_operand.vmem [shape: f32[2,18,64], index: 0, kind: input, shape index: {}]
  %s1 = inlined_call_operand.vmem [shape: f32[2,18,64], index: 1, kind: input, shape index: {}]
  %s2 = inlined_call_operand.vmem [shape: f32[3,64,64], index: 2, kind: input, shape index: {}]
  %s3 = inlined_call_operand.vmem [shape: f32[3,64,64], index: 3, kind: input, shape index: {}]
  %s4 = inlined_call_operand.vmem [shape: f32[3,64,64], index: 4, kind: input, shape index: {}]
  %s5 = inlined_call_operand.vmem [shape: f32[1,64], index: 5, kind: input, shape index: {}]
  %s6 = inlined_call_operand.vmem [shape: f32[1,64], index: 6, kind: input, shape index: {}]
  %s7 = inlined_call_operand.vmem [shape: f32[1,64], index: 7, kind: input, shape index: {}]
  %s8 = inlined_call_operand.vmem [shape: f32[1,64], index: 8, kind: input, shape index: {}]
  %s9 = inlined_call_operand.vmem [shape: f32[2,16,64], index: 9, kind: output, shape index: {}]
  %s10 = sld [smem:[#allocation0]]
  $region69: #{up_forward.1} parent=0
    _
  %s12 = ssub.s32 1, %s10
  %s13 = scalar_select 0, %s12, %s10
  loop: start=0, step=1, limit=4
  $region2: #{up_forward.1} parent=0 // loop_pre_header
    _
  $region3: #{up_forward.1} parent=0 // loop_header
    %s15 = sphi 0, %s19
    %p16 = scmp.ge.s32.totalorder %s15, 4
    %s25 = sphi 0, %s27
    %s28 = sphi 0, %s25
    %s29 = sphi 0, %s28
    %s45 = sphi 0, %s29
    %s51 = sphi 0, %s53
    %s54 = sphi 0, %s51
    %s55 = sphi 0, %s54
    %s71 = sphi 0, %s55
    %s75 = sphi 0, %s75
    %s77 = sphi 0, %s75
    %s78 = sphi 0, %s77
    %s92 = sphi 0, %s78
    %s96 = sphi 0, %s96
    %s98 = sphi 0, %s96
    %s99 = sphi 0, %s98
    %s113 = sphi 0, %s99
    %s117 = sphi 0, %s117
    %s119 = sphi 0, %s117
    %s120 = sphi 0, %s119
    %s134 = sphi 0, %s120
    %s138 = sphi 0, %s138
    %s140 = sphi 0, %s138
    %s141 = sphi 0, %s140
    %s155 = sphi 0, %s141
    %s159 = sphi 0, %s159
    %s161 = sphi 0, %s159
    %s162 = sphi 0, %s161
    %s176 = sphi 0, %s162
    %s180 = sphi 0, %s180
    %s182 = sphi 0, %s180
    %s183 = sphi 0, %s182
    %s197 = sphi 0, %s183
    %s201 = sphi 0, %s201
    %s203 = sphi 0, %s201
    %s204 = sphi 0, %s203
    %s218 = sphi 0, %s204
    %s224 = sphi 0, %s226
    %s227 = sphi 0, %s224
    %s228 = sphi 0, %s227
    %s244 = sphi 0, %s228
  $region4: #{up_forward.1} parent=0 // loop_header_branch
    %18 = sbr.rel (%p16) target = $region8
  $region5: #{up_forward.1} parent=0 // loop_body
    %s20 = ssub.s32 %s15, 1
    %s21 = ssub.s32 %s15, 2
    %s22 = sadd.s32 %s15, 1
    %s23 = ssub.s32 %s15, %s22
    %p24 = scmp.eq.s32.totalorder %s23, 0
    %s26 = sadd.s32 %s25, 1
    %s27 = scalar_select %p24, %s25, %s26
    %p30 = pneg %p24
    %p31 = scmp.eq.s32.totalorder %s15, 1
    %p32 = por %p30, %p31
    %p33 = scmp.ne.s32.totalorder %s25, %s28
    %p34 = scmp.eq.s32.totalorder %s15, 0
    %p35 = por %p33, %p34
    %p36 = scmp.ne.s32.totalorder %s25, %s28
    %p37 = scmp.eq.s32.totalorder %s20, 1
    %p38 = por %p36, %p37
    %p39 = scmp.ne.s32.totalorder %s28, %s29
    %p40 = scmp.eq.s32.totalorder %s20, 0
    %p41 = por %p39, %p40
    %p42 = scmp.ne.s32.totalorder %s28, %s29
    %p43 = scmp.eq.s32.totalorder %s21, 1
    %p44 = por %p42, %p43
    %p46 = scmp.ne.s32.totalorder %s29, %s45
    %p47 = scmp.eq.s32.totalorder %s21, 0
    %p48 = por %p46, %p47
    %s49 = ssub.s32 %s15, %s22
    %p50 = scmp.eq.s32.totalorder %s49, 0
    %s52 = sadd.s32 %s51, 1
    %s53 = scalar_select %p50, %s51, %s52
    %p56 = pneg %p50
    %p57 = scmp.eq.s32.totalorder %s15, 1
    %p58 = por %p56, %p57
    %p59 = scmp.ne.s32.totalorder %s51, %s54
    %p60 = scmp.eq.s32.totalorder %s15, 0
    %p61 = por %p59, %p60
    %p62 = scmp.ne.s32.totalorder %s51, %s54
    %p63 = scmp.eq.s32.totalorder %s20, 1
    %p64 = por %p62, %p63
    %p65 = scmp.ne.s32.totalorder %s54, %s55
    %p66 = scmp.eq.s32.totalorder %s20, 0
    %p67 = por %p65, %p66
    %p68 = scmp.ne.s32.totalorder %s54, %s55
    %p69 = scmp.eq.s32.totalorder %s21, 1
    %p70 = por %p68, %p69
    %p72 = scmp.ne.s32.totalorder %s55, %s71
    %p73 = scmp.eq.s32.totalorder %s21, 0
    %p74 = por %p72, %p73
    %s76 = sadd.s32 %s75, 1
    %p79 = scmp.eq.s32.totalorder %s15, 1
    %p80 = scmp.ne.s32.totalorder %s75, %s77
    %p81 = scmp.eq.s32.totalorder %s15, 0
    %p82 = por %p80, %p81
    %p83 = scmp.ne.s32.totalorder %s75, %s77
    %p84 = scmp.eq.s32.totalorder %s20, 1
    %p85 = por %p83, %p84
    %p86 = scmp.ne.s32.totalorder %s77, %s78
    %p87 = scmp.eq.s32.totalorder %s20, 0
    %p88 = por %p86, %p87
    %p89 = scmp.ne.s32.totalorder %s77, %s78
    %p90 = scmp.eq.s32.totalorder %s21, 1
    %p91 = por %p89, %p90
    %p93 = scmp.ne.s32.totalorder %s78, %s92
    %p94 = scmp.eq.s32.totalorder %s21, 0
    %p95 = por %p93, %p94
    %s97 = sadd.s32 %s96, 1
    %p100 = scmp.eq.s32.totalorder %s15, 1
    %p101 = scmp.ne.s32.totalorder %s96, %s98
    %p102 = scmp.eq.s32.totalorder %s15, 0
    %p103 = por %p101, %p102
    %p104 = scmp.ne.s32.totalorder %s96, %s98
    %p105 = scmp.eq.s32.totalorder %s20, 1
    %p106 = por %p104, %p105
    %p107 = scmp.ne.s32.totalorder %s98, %s99
    %p108 = scmp.eq.s32.totalorder %s20, 0
    %p109 = por %p107, %p108
    %p110 = scmp.ne.s32.totalorder %s98, %s99
    %p111 = scmp.eq.s32.totalorder %s21, 1
    %p112 = por %p110, %p111
    %p114 = scmp.ne.s32.totalorder %s99, %s113
    %p115 = scmp.eq.s32.totalorder %s21, 0
    %p116 = por %p114, %p115
    %s118 = sadd.s32 %s117, 1
    %p121 = scmp.eq.s32.totalorder %s15, 1
    %p122 = scmp.ne.s32.totalorder %s117, %s119
    %p123 = scmp.eq.s32.totalorder %s15, 0
    %p124 = por %p122, %p123
    %p125 = scmp.ne.s32.totalorder %s117, %s119
    %p126 = scmp.eq.s32.totalorder %s20, 1
    %p127 = por %p125, %p126
    %p128 = scmp.ne.s32.totalorder %s119, %s120
    %p129 = scmp.eq.s32.totalorder %s20, 0
    %p130 = por %p128, %p129
    %p131 = scmp.ne.s32.totalorder %s119, %s120
    %p132 = scmp.eq.s32.totalorder %s21, 1
    %p133 = por %p131, %p132
    %p135 = scmp.ne.s32.totalorder %s120, %s134
    %p136 = scmp.eq.s32.totalorder %s21, 0
    %p137 = por %p135, %p136
    %s139 = sadd.s32 %s138, 1
    %p142 = scmp.eq.s32.totalorder %s15, 1
    %p143 = scmp.ne.s32.totalorder %s138, %s140
    %p144 = scmp.eq.s32.totalorder %s15, 0
    %p145 = por %p143, %p144
    %p146 = scmp.ne.s32.totalorder %s138, %s140
    %p147 = scmp.eq.s32.totalorder %s20, 1
    %p148 = por %p146, %p147
    %p149 = scmp.ne.s32.totalorder %s140, %s141
    %p150 = scmp.eq.s32.totalorder %s20, 0
    %p151 = por %p149, %p150
    %p152 = scmp.ne.s32.totalorder %s140, %s141
    %p153 = scmp.eq.s32.totalorder %s21, 1
    %p154 = por %p152, %p153
    %p156 = scmp.ne.s32.totalorder %s141, %s155
    %p157 = scmp.eq.s32.totalorder %s21, 0
    %p158 = por %p156, %p157
    %s160 = sadd.s32 %s159, 1
    %p163 = scmp.eq.s32.totalorder %s15, 1
    %p164 = scmp.ne.s32.totalorder %s159, %s161
    %p165 = scmp.eq.s32.totalorder %s15, 0
    %p166 = por %p164, %p165
    %p167 = scmp.ne.s32.totalorder %s159, %s161
    %p168 = scmp.eq.s32.totalorder %s20, 1
    %p169 = por %p167, %p168
    %p170 = scmp.ne.s32.totalorder %s161, %s162
    %p171 = scmp.eq.s32.totalorder %s20, 0
    %p172 = por %p170, %p171
    %p173 = scmp.ne.s32.totalorder %s161, %s162
    %p174 = scmp.eq.s32.totalorder %s21, 1
    %p175 = por %p173, %p174
    %p177 = scmp.ne.s32.totalorder %s162, %s176
    %p178 = scmp.eq.s32.totalorder %s21, 0
    %p179 = por %p177, %p178
    %s181 = sadd.s32 %s180, 1
    %p184 = scmp.eq.s32.totalorder %s15, 1
    %p185 = scmp.ne.s32.totalorder %s180, %s182
    %p186 = scmp.eq.s32.totalorder %s15, 0
    %p187 = por %p185, %p186
    %p188 = scmp.ne.s32.totalorder %s180, %s182
    %p189 = scmp.eq.s32.totalorder %s20, 1
    %p190 = por %p188, %p189
    %p191 = scmp.ne.s32.totalorder %s182, %s183
    %p192 = scmp.eq.s32.totalorder %s20, 0
    %p193 = por %p191, %p192
    %p194 = scmp.ne.s32.totalorder %s182, %s183
    %p195 = scmp.eq.s32.totalorder %s21, 1
    %p196 = por %p194, %p195
    %p198 = scmp.ne.s32.totalorder %s183, %s197
    %p199 = scmp.eq.s32.totalorder %s21, 0
    %p200 = por %p198, %p199
    %s202 = sadd.s32 %s201, 1
    %p205 = scmp.eq.s32.totalorder %s15, 1
    %p206 = scmp.ne.s32.totalorder %s201, %s203
    %p207 = scmp.eq.s32.totalorder %s15, 0
    %p208 = por %p206, %p207
    %p209 = scmp.ne.s32.totalorder %s201, %s203
    %p210 = scmp.eq.s32.totalorder %s20, 1
    %p211 = por %p209, %p210
    %p212 = scmp.ne.s32.totalorder %s203, %s204
    %p213 = scmp.eq.s32.totalorder %s20, 0
    %p214 = por %p212, %p213
    %p215 = scmp.ne.s32.totalorder %s203, %s204
    %p216 = scmp.eq.s32.totalorder %s21, 1
    %p217 = por %p215, %p216
    %p219 = scmp.ne.s32.totalorder %s204, %s218
    %p220 = scmp.eq.s32.totalorder %s21, 0
    %p221 = por %p219, %p220
    %s222 = ssub.s32 %s15, %s22
    %p223 = scmp.eq.s32.totalorder %s222, 0
    %s225 = sadd.s32 %s224, 1
    %s226 = scalar_select %p223, %s224, %s225
    %p229 = pneg %p223
    %p230 = scmp.eq.s32.totalorder %s15, 1
    %p231 = por %p229, %p230
    %p232 = scmp.ne.s32.totalorder %s224, %s227
    %p233 = scmp.eq.s32.totalorder %s15, 0
    %p234 = por %p232, %p233
    %p235 = scmp.ne.s32.totalorder %s224, %s227
    %p236 = scmp.eq.s32.totalorder %s20, 1
    %p237 = por %p235, %p236
    %p238 = scmp.ne.s32.totalorder %s227, %s228
    %p239 = scmp.eq.s32.totalorder %s20, 0
    %p240 = por %p238, %p239
    %p241 = scmp.ne.s32.totalorder %s227, %s228
    %p242 = scmp.eq.s32.totalorder %s21, 1
    %p243 = por %p241, %p242
    %p245 = scmp.ne.s32.totalorder %s228, %s244
    %p246 = scmp.eq.s32.totalorder %s21, 0
    %p247 = por %p245, %p246
    %p248 = scmp.le.s32.totalorder 1, %s15
    %p249 = scmp.lt.s32.totalorder %s15, 3
    %p250 = pnand %p248, %p249
    %p251 = pneg %p250
    // Predicated region
    $region9: #{up_forward.1} parent=5 // pred_check
      _
    $region10: #{up_forward.1} parent=5 // pred_check_branch
      %253 = sbr.rel (%p250) target = $region12
    $region11: #{up_forward.1} parent=5 // pred_region
      %s254 = ssub.s32 %s15, 1
      // Predicated region
      $region13: #{up_forward.1} parent=11 // pred_check
        %p255 = pneg %p88
      $region14: #{up_forward.1} parent=11 // pred_check_branch
        %257 = sbr.rel (%p255) target = $region16
      $region15: #{up_forward.1} parent=11 // pred_region
        _
      $region16: #{up_forward.1} parent=11 // pred_fallthru
        _
      // Predicated region
      $region17: #{up_forward.1} parent=11 // pred_check
        %p258 = pneg %p109
      $region18: #{up_forward.1} parent=11 // pred_check_branch
        %260 = sbr.rel (%p258) target = $region20
      $region19: #{up_forward.1} parent=11 // pred_region
        _
      $region20: #{up_forward.1} parent=11 // pred_fallthru
        _
      // Predicated region
      $region21: #{up_forward.1} parent=11 // pred_check
        %p261 = pneg %p130
      $region22: #{up_forward.1} parent=11 // pred_check_branch
        %263 = sbr.rel (%p261) target = $region24
      $region23: #{up_forward.1} parent=11 // pred_region
        _
      $region24: #{up_forward.1} parent=11 // pred_fallthru
        _
      // Predicated region
      $region25: #{up_forward.1} parent=11 // pred_check
        %p264 = pneg %p151
      $region26: #{up_forward.1} parent=11 // pred_check_branch
        %266 = sbr.rel (%p264) target = $region28
      $region27: #{up_forward.1} parent=11 // pred_region
        _
      $region28: #{up_forward.1} parent=11 // pred_fallthru
        _
      // Predicated region
      $region29: #{up_forward.1} parent=11 // pred_check
        %p267 = pneg %p172
      $region30: #{up_forward.1} parent=11 // pred_check_branch
        %269 = sbr.rel (%p267) target = $region32
      $region31: #{up_forward.1} parent=11 // pred_region
        _
      $region32: #{up_forward.1} parent=11 // pred_fallthru
        _
      // Predicated region
      $region33: #{up_forward.1} parent=11 // pred_check
        %p270 = pneg %p193
      $region34: #{up_forward.1} parent=11 // pred_check_branch
        %272 = sbr.rel (%p270) target = $region36
      $region35: #{up_forward.1} parent=11 // pred_region
        _
      $region36: #{up_forward.1} parent=11 // pred_fallthru
        _
      // Predicated region
      $region37: #{up_forward.1} parent=11 // pred_check
        %p273 = pneg %p214
      $region38: #{up_forward.1} parent=11 // pred_check_branch
        %275 = sbr.rel (%p273) target = $region40
      $region39: #{up_forward.1} parent=11 // pred_region
        _
      $region40: #{up_forward.1} parent=11 // pred_fallthru
        _
    $region12: #{up_forward.1} parent=5 // pred_fallthru
      _
    %p276 = scmp.lt.s32.totalorder %s15, 2
    // Predicated region
    $region41: #{up_forward.1} parent=5 // pred_check
      %p277 = pneg %p276
    $region42: #{up_forward.1} parent=5 // pred_check_branch
      %279 = sbr.rel (%p277) target = $region44
    $region43: #{up_forward.1} parent=5 // pred_region
      // Predicated region
      $region45: #{up_forward.1} parent=43 // pred_check
        %p280 = pneg %p35
      $region46: #{up_forward.1} parent=43 // pred_check_branch
        %282 = sbr.rel (%p280) target = $region48
      $region47: #{up_forward.1} parent=43 // pred_region
        %p283 = scmp.lt.s32.totalorder %s15, 1
        %s284 = scalar_select %p283, %s15, 1
        %s285 = smul.addr %s284, 3
        %s286 = smul.addr %s285, 8
        %s287 = scalar_lea.vmem %s0, %s286
      $region48: #{up_forward.1} parent=43 // pred_fallthru
        _
      // Predicated region
      $region49: #{up_forward.1} parent=43 // pred_check
        %p288 = pneg %p61
      $region50: #{up_forward.1} parent=43 // pred_check_branch
        %290 = sbr.rel (%p288) target = $region52
      $region51: #{up_forward.1} parent=43 // pred_region
        %p291 = scmp.lt.s32.totalorder %s15, 1
        %s292 = scalar_select %p291, %s15, 1
        %s293 = smul.addr %s292, 3
        %s294 = smul.addr %s293, 8
        %s295 = scalar_lea.vmem %s1, %s294
      $region52: #{up_forward.1} parent=43 // pred_fallthru
        _
    $region44: #{up_forward.1} parent=5 // pred_fallthru
      _
    %p296 = scmp.le.s32.totalorder 1, %s15
    %p297 = scmp.lt.s32.totalorder %s15, 3
    %p298 = pnand %p296, %p297
    %p299 = pneg %p298
    // Predicated region
    $region53: #{up_forward.1} parent=5 // pred_check
      _
    $region54: #{up_forward.1} parent=5 // pred_check_branch
      %301 = sbr.rel (%p298) target = $region56
    $region55: #{up_forward.1} parent=5 // pred_region
      %s302 = ssub.s32 %s15, 1
      %p303 = scmp.lt.s32.totalorder %s20, 1
      %s304 = scalar_select %p303, %s20, 1
      %s305 = smul.addr %s304, 3
      %s306 = smul.addr %s305, 8
      %s307 = scalar_lea.vmem %s0, %s306
      %p308 = pneg %p41
      %p309 = pneg %p38
      %p310 = scmp.lt.s32.totalorder %s20, 1
      %s311 = scalar_select %p310, %s20, 1
      %s312 = smul.addr %s311, 3
      %s313 = smul.addr %s312, 8
      %s314 = scalar_lea.vmem %s1, %s313
      %p315 = pneg %p67
      %p316 = pneg %p64
      %p317 = pneg %p88
      %p318 = pneg %p85
      %p319 = pneg %p109
      %p320 = pneg %p106
      %p321 = pneg %p130
      %p322 = pneg %p127
      %p323 = pneg %p151
      %p324 = pneg %p148
      %p325 = pneg %p172
      %p326 = pneg %p169
      %p327 = pneg %p193
      %p328 = pneg %p190
      %p329 = pneg %p214
      %p330 = pneg %p211
      %p331 = pneg %p240
      %p332 = pneg %p237
      %p333 = scmp.lt.s32.totalorder %s20, 1
      %s334 = scalar_select %p333, %s20, 1
      %s335 = smul.addr %s334, 2
      %s336 = smul.addr %s335, 8
      %s337 = scalar_lea.vmem %s9, %s336
      %p338 = scmp.lt.s32.totalorder %s20, 1
      %s339 = scalar_select %p338, %s20, 1
      %s340 = smul.addr %s339, 3
      %s341 = smul.addr %s340, 8
      %s342 = scalar_lea.vmem %s0, %s341
      %p343 = scmp.lt.s32.totalorder %s20, 1
      %s344 = scalar_select %p343, %s20, 1
      %s345 = smul.addr %s344, 3
      %s346 = smul.addr %s345, 8
      %s347 = scalar_lea.vmem %s1, %s346
      %p348 = scmp.lt.s32.totalorder %s20, 1
      %s349 = scalar_select %p348, %s20, 1
      %s350 = smul.addr %s349, 2
      %s351 = smul.addr %s350, 8
      %s352 = scalar_lea.vmem %s9, %s351
      %v353 = vld [vmem:[%s342] sm:$0xff]
      %v354 = vld [vmem:[%s342 + $0x8] sm:$0xff]
      %v355 = vld [vmem:[%s2] sm:$0xff]
      %v356 = vld [vmem:[%s2 + $0x8] sm:$0xff]
      %v357 = vld [vmem:[%s2 + $0x10] sm:$0xff]
      %v358 = vld [vmem:[%s2 + $0x18] sm:$0xff]
      %v359 = vld [vmem:[%s2 + $0x20] sm:$0xff]
      %v360 = vld [vmem:[%s2 + $0x28] sm:$0xff]
      %v361 = vld [vmem:[%s2 + $0x30] sm:$0xff]
      %v362 = vld [vmem:[%s2 + $0x38] sm:$0xff]
      %v363 = vld [vmem:[%s347] sm:$0xff]
      %v364 = vld [vmem:[%s347 + $0x8] sm:$0xff]
      %v365 = vld [vmem:[%s3] sm:$0xff]
      %v366 = vld [vmem:[%s3 + $0x8] sm:$0xff]
      %v367 = vld [vmem:[%s3 + $0x10] sm:$0xff]
      %v368 = vld [vmem:[%s3 + $0x18] sm:$0xff]
      %v369 = vld [vmem:[%s3 + $0x20] sm:$0xff]
      %v370 = vld [vmem:[%s3 + $0x28] sm:$0xff]
      %v371 = vld [vmem:[%s3 + $0x30] sm:$0xff]
      %v372 = vld [vmem:[%s3 + $0x38] sm:$0xff]
      %vm373 = vcmask 523264
      %v375 = vsel %vm373, %v363, 0
      %v378 = vsel %vm373, %v364, 0
      %380 = vmatpush.msra.mxu0 0.0
      %381 = vmatpush.msra.mxu0 0.0
      %382 = vmatpush.msra.mxu0 0.0
      %383 = vmatpush.msra.mxu0 0.0
      %384 = vmatpush.msra.mxu0 0.0
      %385 = vmatpush.msra.mxu0 0.0
      %386 = vmatpush.msra.mxu0 0.0
      %387 = vmatpush.msra.mxu0 0.0
      %388 = vmatpush.msra.mxu0 %v372
      %389 = vmatpush.msra.mxu0 %v371
      %390 = vmatpush.msra.mxu0 %v370
      %391 = vmatpush.msra.mxu0 %v369
      %392 = vmatpush.msra.mxu0 %v368
      %393 = vmatpush.msra.mxu0 %v367
      %394 = vmatpush.msra.mxu0 %v366
      %395 = vmatpush.msra.mxu0 %v365
      %396 = vmatmul.f32.gmra.mxu0 %v375
      %v397 = vpop.f32.mrf.mxu0
      %v398 = vadd.f32 0.0, %v397
      %399 = vmatmul.f32.gmra.mxu0 %v378
      %v400 = vpop.f32.mrf.mxu0
      %v401 = vadd.f32 0.0, %v400
      %402 = vdwg.mxu0
      %v404 = vsel %vm373, %v353, 0
      %v407 = vsel %vm373, %v354, 0
      %409 = vmatpush.msra.mxu0 0.0
      %410 = vmatpush.msra.mxu0 0.0
      %411 = vmatpush.msra.mxu0 0.0
      %412 = vmatpush.msra.mxu0 0.0
      %413 = vmatpush.msra.mxu0 0.0
      %414 = vmatpush.msra.mxu0 0.0
      %415 = vmatpush.msra.mxu0 0.0
      %416 = vmatpush.msra.mxu0 0.0
      %417 = vmatpush.msra.mxu0 %v362
      %418 = vmatpush.msra.mxu0 %v361
      %419 = vmatpush.msra.mxu0 %v360
      %420 = vmatpush.msra.mxu0 %v359
      %421 = vmatpush.msra.mxu0 %v358
      %422 = vmatpush.msra.mxu0 %v357
      %423 = vmatpush.msra.mxu0 %v356
      %424 = vmatpush.msra.mxu0 %v355
      %425 = vmatmul.f32.gmra.mxu0 %v404
      %v426 = vpop.f32.mrf.mxu0
      %v427 = vadd.f32 %v398, %v426
      %428 = vmatmul.f32.gmra.mxu0 %v407
      %v429 = vpop.f32.mrf.mxu0
      %v430 = vadd.f32 %v401, %v429
      %431 = vdwg.mxu0
      %v432 = vld [vmem:[%s342 + $0x1] sm:$0xff]
      %v433 = vld [vmem:[%s342 + $0x9] sm:$0xff]
      %s434 = scalar_lea.vmem %s2, 64
      %v435 = vld [vmem:[%s434] sm:$0xff]
      %v436 = vld [vmem:[%s434 + $0x8] sm:$0xff]
      %v437 = vld [vmem:[%s434 + $0x10] sm:$0xff]
      %v438 = vld [vmem:[%s434 + $0x18] sm:$0xff]
      %v439 = vld [vmem:[%s434 + $0x20] sm:$0xff]
      %v440 = vld [vmem:[%s434 + $0x28] sm:$0xff]
      %v441 = vld [vmem:[%s434 + $0x30] sm:$0xff]
      %v442 = vld [vmem:[%s434 + $0x38] sm:$0xff]
      %v444 = vsel %vm373, %v432, 0
      %v447 = vsel %vm373, %v433, 0
      %449 = vmatpush.msra.mxu0 0.0
      %450 = vmatpush.msra.mxu0 0.0
      %451 = vmatpush.msra.mxu0 0.0
      %452 = vmatpush.msra.mxu0 0.0
      %453 = vmatpush.msra.mxu0 0.0
      %454 = vmatpush.msra.mxu0 0.0
      %455 = vmatpush.msra.mxu0 0.0
      %456 = vmatpush.msra.mxu0 0.0
      %457 = vmatpush.msra.mxu0 %v442
      %458 = vmatpush.msra.mxu0 %v441
      %459 = vmatpush.msra.mxu0 %v440
      %460 = vmatpush.msra.mxu0 %v439
      %461 = vmatpush.msra.mxu0 %v438
      %462 = vmatpush.msra.mxu0 %v437
      %463 = vmatpush.msra.mxu0 %v436
      %464 = vmatpush.msra.mxu0 %v435
      %465 = vmatmul.f32.gmra.mxu0 %v444
      %v466 = vpop.f32.mrf.mxu0
      %v467 = vadd.f32 0.0, %v466
      %468 = vmatmul.f32.gmra.mxu0 %v447
      %v469 = vpop.f32.mrf.mxu0
      %v470 = vadd.f32 0.0, %v469
      %471 = vdwg.mxu0
      %v472 = vadd.f32 %v427, %v467
      %v473 = vadd.f32 %v430, %v470
      %v474 = vld [vmem:[%s347 + $0x1] sm:$0xff]
      %v475 = vld [vmem:[%s347 + $0x9] sm:$0xff]
      %s476 = scalar_lea.vmem %s3, 64
      %v477 = vld [vmem:[%s476] sm:$0xff]
      %v478 = vld [vmem:[%s476 + $0x8] sm:$0xff]
      %v479 = vld [vmem:[%s476 + $0x10] sm:$0xff]
      %v480 = vld [vmem:[%s476 + $0x18] sm:$0xff]
      %v481 = vld [vmem:[%s476 + $0x20] sm:$0xff]
      %v482 = vld [vmem:[%s476 + $0x28] sm:$0xff]
      %v483 = vld [vmem:[%s476 + $0x30] sm:$0xff]
      %v484 = vld [vmem:[%s476 + $0x38] sm:$0xff]
      %v486 = vsel %vm373, %v474, 0
      %v489 = vsel %vm373, %v475, 0
      %491 = vmatpush.msra.mxu0 0.0
      %492 = vmatpush.msra.mxu0 0.0
      %493 = vmatpush.msra.mxu0 0.0
      %494 = vmatpush.msra.mxu0 0.0
      %495 = vmatpush.msra.mxu0 0.0
      %496 = vmatpush.msra.mxu0 0.0
      %497 = vmatpush.msra.mxu0 0.0
      %498 = vmatpush.msra.mxu0 0.0
      %499 = vmatpush.msra.mxu0 %v484
      %500 = vmatpush.msra.mxu0 %v483
      %501 = vmatpush.msra.mxu0 %v482
      %502 = vmatpush.msra.mxu0 %v481
      %503 = vmatpush.msra.mxu0 %v480
      %504 = vmatpush.msra.mxu0 %v479
      %505 = vmatpush.msra.mxu0 %v478
      %506 = vmatpush.msra.mxu0 %v477
      %507 = vmatmul.f32.gmra.mxu0 %v486
      %v508 = vpop.f32.mrf.mxu0
      %v509 = vadd.f32 0.0, %v508
      %510 = vmatmul.f32.gmra.mxu0 %v489
      %v511 = vpop.f32.mrf.mxu0
      %v512 = vadd.f32 0.0, %v511
      %513 = vdwg.mxu0
      %v514 = vadd.f32 %v472, %v509
      %v515 = vadd.f32 %v473, %v512
      %v516 = vld [vmem:[%s342 + $0x2] sm:$0xff]
      %v517 = vld [vmem:[%s342 + $0xa] sm:$0xff]
      %s518 = scalar_lea.vmem %s2, 128
      %v519 = vld [vmem:[%s518] sm:$0xff]
      %v520 = vld [vmem:[%s518 + $0x8] sm:$0xff]
      %v521 = vld [vmem:[%s518 + $0x10] sm:$0xff]
      %v522 = vld [vmem:[%s518 + $0x18] sm:$0xff]
      %v523 = vld [vmem:[%s518 + $0x20] sm:$0xff]
      %v524 = vld [vmem:[%s518 + $0x28] sm:$0xff]
      %v525 = vld [vmem:[%s518 + $0x30] sm:$0xff]
      %v526 = vld [vmem:[%s518 + $0x38] sm:$0xff]
      %v528 = vsel %vm373, %v516, 0
      %v531 = vsel %vm373, %v517, 0
      %533 = vmatpush.msra.mxu0 0.0
      %534 = vmatpush.msra.mxu0 0.0
      %535 = vmatpush.msra.mxu0 0.0
      %536 = vmatpush.msra.mxu0 0.0
      %537 = vmatpush.msra.mxu0 0.0
      %538 = vmatpush.msra.mxu0 0.0
      %539 = vmatpush.msra.mxu0 0.0
      %540 = vmatpush.msra.mxu0 0.0
      %541 = vmatpush.msra.mxu0 %v526
      %542 = vmatpush.msra.mxu0 %v525
      %543 = vmatpush.msra.mxu0 %v524
      %544 = vmatpush.msra.mxu0 %v523
      %545 = vmatpush.msra.mxu0 %v522
      %546 = vmatpush.msra.mxu0 %v521
      %547 = vmatpush.msra.mxu0 %v520
      %548 = vmatpush.msra.mxu0 %v519
      %549 = vmatmul.f32.gmra.mxu0 %v528
      %v550 = vpop.f32.mrf.mxu0
      %v551 = vadd.f32 0.0, %v550
      %552 = vmatmul.f32.gmra.mxu0 %v531
      %v553 = vpop.f32.mrf.mxu0
      %v554 = vadd.f32 0.0, %v553
      %555 = vdwg.mxu0
      %v556 = vadd.f32 %v514, %v551
      %v557 = vadd.f32 %v515, %v554
      %v558 = vld [vmem:[%s347 + $0x2] sm:$0xff]
      %v559 = vld [vmem:[%s347 + $0xa] sm:$0xff]
      %s560 = scalar_lea.vmem %s3, 128
      %v561 = vld [vmem:[%s560] sm:$0xff]
      %v562 = vld [vmem:[%s560 + $0x8] sm:$0xff]
      %v563 = vld [vmem:[%s560 + $0x10] sm:$0xff]
      %v564 = vld [vmem:[%s560 + $0x18] sm:$0xff]
      %v565 = vld [vmem:[%s560 + $0x20] sm:$0xff]
      %v566 = vld [vmem:[%s560 + $0x28] sm:$0xff]
      %v567 = vld [vmem:[%s560 + $0x30] sm:$0xff]
      %v568 = vld [vmem:[%s560 + $0x38] sm:$0xff]
      %v570 = vsel %vm373, %v558, 0
      %v573 = vsel %vm373, %v559, 0
      %575 = vmatpush.msra.mxu0 0.0
      %576 = vmatpush.msra.mxu0 0.0
      %577 = vmatpush.msra.mxu0 0.0
      %578 = vmatpush.msra.mxu0 0.0
      %579 = vmatpush.msra.mxu0 0.0
      %580 = vmatpush.msra.mxu0 0.0
      %581 = vmatpush.msra.mxu0 0.0
      %582 = vmatpush.msra.mxu0 0.0
      %583 = vmatpush.msra.mxu0 %v568
      %584 = vmatpush.msra.mxu0 %v567
      %585 = vmatpush.msra.mxu0 %v566
      %586 = vmatpush.msra.mxu0 %v565
      %587 = vmatpush.msra.mxu0 %v564
      %588 = vmatpush.msra.mxu0 %v563
      %589 = vmatpush.msra.mxu0 %v562
      %590 = vmatpush.msra.mxu0 %v561
      %591 = vmatmul.f32.gmra.mxu0 %v570
      %v592 = vpop.f32.mrf.mxu0
      %v593 = vadd.f32 0.0, %v592
      %594 = vmatmul.f32.gmra.mxu0 %v573
      %v595 = vpop.f32.mrf.mxu0
      %v596 = vadd.f32 0.0, %v595
      %597 = vdwg.mxu0
      %v598 = vadd.f32 %v556, %v593
      %v599 = vadd.f32 %v557, %v596
      %v600 = vld [vmem:[%s5] sm:$0x1]
      %v602 = vperm.slane %v600, 0
      %v604 = vmul.f32 %v598, %v602
      %v605 = vmul.f32 %v599, %v602
      %v606 = vld [vmem:[%s6] sm:$0x1]
      %v608 = vperm.slane %v606, 0
      %v610 = vadd.f32 %v604, %v608
      %v611 = vadd.f32 %v605, %v608
      %v612 = vmax.f32 %v610, 0.0
      %v613 = vmax.f32 %v611, 0.0
      %614 = vst.msk [vmem:[#allocation2] sm:$0xff] %vm373, 0.0
      %615 = vst.msk [vmem:[#allocation2 + $0x8] sm:$0xff] %vm373, 0.0
      %616 = vst.msk [vmem:[#allocation2 + $0x10] sm:$0xff] %vm373, 0.0
      %617 = vst.msk [vmem:[#allocation2 + $0x18] sm:$0xff] %vm373, 0.0
      %618 = vst.msk [vmem:[#allocation2 + $0x8] sm:$0xff] %vm373, %v612
      %619 = vst.msk [vmem:[#allocation2 + $0x10] sm:$0xff] %vm373, %v613
      %v620 = vld [vmem:[#allocation2 + $0x7] sm:$0xff]
      %v621 = vld [vmem:[#allocation2 + $0xf] sm:$0xff]
      %v622 = vld [vmem:[%s4] sm:$0xff]
      %v623 = vld [vmem:[%s4 + $0x8] sm:$0xff]
      %v624 = vld [vmem:[%s4 + $0x10] sm:$0xff]
      %v625 = vld [vmem:[%s4 + $0x18] sm:$0xff]
      %v626 = vld [vmem:[%s4 + $0x20] sm:$0xff]
      %v627 = vld [vmem:[%s4 + $0x28] sm:$0xff]
      %v628 = vld [vmem:[%s4 + $0x30] sm:$0xff]
      %v629 = vld [vmem:[%s4 + $0x38] sm:$0xff]
      %v630 = vld [vmem:[#allocation2 + $0x8] sm:$0xff]
      %v631 = vld [vmem:[#allocation2 + $0x10] sm:$0xff]
      %s632 = scalar_lea.vmem %s4, 64
      %v633 = vld [vmem:[%s632] sm:$0xff]
      %v634 = vld [vmem:[%s632 + $0x8] sm:$0xff]
      %v635 = vld [vmem:[%s632 + $0x10] sm:$0xff]
      %v636 = vld [vmem:[%s632 + $0x18] sm:$0xff]
      %v637 = vld [vmem:[%s632 + $0x20] sm:$0xff]
      %v638 = vld [vmem:[%s632 + $0x28] sm:$0xff]
      %v639 = vld [vmem:[%s632 + $0x30] sm:$0xff]
      %v640 = vld [vmem:[%s632 + $0x38] sm:$0xff]
      %v642 = vsel %vm373, %v630, 0
      %v645 = vsel %vm373, %v631, 0
      %647 = vmatpush.msra.mxu0 0.0
      %648 = vmatpush.msra.mxu0 0.0
      %649 = vmatpush.msra.mxu0 0.0
      %650 = vmatpush.msra.mxu0 0.0
      %651 = vmatpush.msra.mxu0 0.0
      %652 = vmatpush.msra.mxu0 0.0
      %653 = vmatpush.msra.mxu0 0.0
      %654 = vmatpush.msra.mxu0 0.0
      %655 = vmatpush.msra.mxu0 %v640
      %656 = vmatpush.msra.mxu0 %v639
      %657 = vmatpush.msra.mxu0 %v638
      %658 = vmatpush.msra.mxu0 %v637
      %659 = vmatpush.msra.mxu0 %v636
      %660 = vmatpush.msra.mxu0 %v635
      %661 = vmatpush.msra.mxu0 %v634
      %662 = vmatpush.msra.mxu0 %v633
      %663 = vmatmul.f32.gmra.mxu0 %v642
      %v664 = vpop.f32.mrf.mxu0
      %v665 = vadd.f32 0.0, %v664
      %666 = vmatmul.f32.gmra.mxu0 %v645
      %v667 = vpop.f32.mrf.mxu0
      %v668 = vadd.f32 0.0, %v667
      %669 = vdwg.mxu0
      %v671 = vsel %vm373, %v620, 0
      %v674 = vsel %vm373, %v621, 0
      %676 = vmatpush.msra.mxu0 0.0
      %677 = vmatpush.msra.mxu0 0.0
      %678 = vmatpush.msra.mxu0 0.0
      %679 = vmatpush.msra.mxu0 0.0
      %680 = vmatpush.msra.mxu0 0.0
      %681 = vmatpush.msra.mxu0 0.0
      %682 = vmatpush.msra.mxu0 0.0
      %683 = vmatpush.msra.mxu0 0.0
      %684 = vmatpush.msra.mxu0 %v629
      %685 = vmatpush.msra.mxu0 %v628
      %686 = vmatpush.msra.mxu0 %v627
      %687 = vmatpush.msra.mxu0 %v626
      %688 = vmatpush.msra.mxu0 %v625
      %689 = vmatpush.msra.mxu0 %v624
      %690 = vmatpush.msra.mxu0 %v623
      %691 = vmatpush.msra.mxu0 %v622
      %692 = vmatmul.f32.gmra.mxu0 %v671
      %v693 = vpop.f32.mrf.mxu0
      %v694 = vadd.f32 %v665, %v693
      %695 = vmatmul.f32.gmra.mxu0 %v674
      %v696 = vpop.f32.mrf.mxu0
      %v697 = vadd.f32 %v668, %v696
      %698 = vdwg.mxu0
      %v699 = vld [vmem:[#allocation2 + $0x9] sm:$0xff]
      %v700 = vld [vmem:[#allocation2 + $0x11] sm:$0xff]
      %s701 = scalar_lea.vmem %s4, 128
      %v702 = vld [vmem:[%s701] sm:$0xff]
      %v703 = vld [vmem:[%s701 + $0x8] sm:$0xff]
      %v704 = vld [vmem:[%s701 + $0x10] sm:$0xff]
      %v705 = vld [vmem:[%s701 + $0x18] sm:$0xff]
      %v706 = vld [vmem:[%s701 + $0x20] sm:$0xff]
      %v707 = vld [vmem:[%s701 + $0x28] sm:$0xff]
      %v708 = vld [vmem:[%s701 + $0x30] sm:$0xff]
      %v709 = vld [vmem:[%s701 + $0x38] sm:$0xff]
      %v711 = vsel %vm373, %v699, 0
      %v714 = vsel %vm373, %v700, 0
      %716 = vmatpush.msra.mxu0 0.0
      %717 = vmatpush.msra.mxu0 0.0
      %718 = vmatpush.msra.mxu0 0.0
      %719 = vmatpush.msra.mxu0 0.0
      %720 = vmatpush.msra.mxu0 0.0
      %721 = vmatpush.msra.mxu0 0.0
      %722 = vmatpush.msra.mxu0 0.0
      %723 = vmatpush.msra.mxu0 0.0
      %724 = vmatpush.msra.mxu0 %v709
      %725 = vmatpush.msra.mxu0 %v708
      %726 = vmatpush.msra.mxu0 %v707
      %727 = vmatpush.msra.mxu0 %v706
      %728 = vmatpush.msra.mxu0 %v705
      %729 = vmatpush.msra.mxu0 %v704
      %730 = vmatpush.msra.mxu0 %v703
      %731 = vmatpush.msra.mxu0 %v702
      %732 = vmatmul.f32.gmra.mxu0 %v711
      %v733 = vpop.f32.mrf.mxu0
      %v734 = vadd.f32 0.0, %v733
      %735 = vmatmul.f32.gmra.mxu0 %v714
      %v736 = vpop.f32.mrf.mxu0
      %v737 = vadd.f32 0.0, %v736
      %738 = vdwg.mxu0
      %v739 = vadd.f32 %v694, %v734
      %v740 = vadd.f32 %v697, %v737
      %v741 = vld [vmem:[%s7] sm:$0x1]
      %v743 = vperm.slane %v741, 0
      %v745 = vmul.f32 %v739, %v743
      %v746 = vmul.f32 %v740, %v743
      %v747 = vld [vmem:[%s8] sm:$0x1]
      %v749 = vperm.slane %v747, 0
      %v751 = vadd.f32 %v745, %v749
      %v752 = vadd.f32 %v746, %v749
      %v753 = vmax.f32 %v751, 0.0
      %v754 = vmax.f32 %v752, 0.0
      %755 = vst.msk [vmem:[%s352] sm:$0xff] %vm373, %v753
      %756 = vst.msk [vmem:[%s352 + $0x8] sm:$0xff] %vm373, %v754
      %p757 = scmp.lt.s32.totalorder %s20, 1
      %s758 = scalar_select %p757, %s20, 1
      %s759 = smul.addr %s758, 2
      %s760 = smul.addr %s759, 8
      %s761 = scalar_lea.vmem %s9, %s760
      // Predicated region
      $region57: #{up_forward.1} parent=55 // pred_check
        %p762 = pneg %p237
      $region58: #{up_forward.1} parent=55 // pred_check_branch
        %764 = sbr.rel (%p762) target = $region60
      $region59: #{up_forward.1} parent=55 // pred_region
        _
      $region60: #{up_forward.1} parent=55 // pred_fallthru
        _
    $region56: #{up_forward.1} parent=5 // pred_fallthru
      _
    %p765 = scmp.le.s32.totalorder 2, %s15
    // Predicated region
    $region61: #{up_forward.1} parent=5 // pred_check
      %p766 = pneg %p765
    $region62: #{up_forward.1} parent=5 // pred_check_branch
      %768 = sbr.rel (%p766) target = $region64
    $region63: #{up_forward.1} parent=5 // pred_region
      %s769 = ssub.s32 %s15, 2
      // Predicated region
      $region65: #{up_forward.1} parent=63 // pred_check
        %p770 = pneg %p243
      $region66: #{up_forward.1} parent=63 // pred_check_branch
        %772 = sbr.rel (%p770) target = $region68
      $region67: #{up_forward.1} parent=63 // pred_region
        %p773 = scmp.lt.s32.totalorder %s21, 1
        %s774 = scalar_select %p773, %s21, 1
        %s775 = smul.addr %s774, 2
        %s776 = smul.addr %s775, 8
        %s777 = scalar_lea.vmem %s9, %s776
      $region68: #{up_forward.1} parent=63 // pred_fallthru
        _
    $region64: #{up_forward.1} parent=5 // pred_fallthru
      _
  $region6: #{up_forward.1} parent=0 // loop_footer
    %s19 = sadd.s32 1, %s15
  $region7: #{up_forward.1} parent=0 // loop_footer_branch
    %14 = sbr.rel target = $region3
  $region8: #{up_forward.1} parent=0 // loop_exit
    _

</llo_original>
